<compile_context>
chip_gen: v7x
topology: tpu7x:2x2x1
jax: 0.10.0
libtpu: 0.0.40
codegen_flags: <defaults>
</compile_context>

<pallas_src>
import math

import jax
import jax.numpy as jnp
from jax.experimental import pallas as pl
from jax.experimental.pallas import tpu as pltpu


def _gelu_tanh(x):
    # exact match of the reference `gelu` (tanh approximation), computed in f32
    return 0.5 * x * (1.0 + jnp.tanh(math.sqrt(2.0 / math.pi) * (x + 0.044715 * x * x * x)))


def _round_up(x, m):
    return ((x + m - 1) // m) * m


def ffn_kernel(x_ref, w1_ref, b1_ref, w2_ref, b2_ref, out_ref, acc_ref):
    # grid = (row_tiles [parallel], inter_tiles [arbitrary reduction])
    i = pl.program_id(1)

    @pl.when(i == 0)
    def _():
        acc_ref[...] = jnp.zeros_like(acc_ref)

    # (tm, Dp) bf16 @ (Dp, ti) bf16 -> f32 accumulation on the MXU
    h = jnp.dot(x_ref[...], w1_ref[...], preferred_element_type=jnp.float32)
    h = h + b1_ref[...]                       # f32 bias add (broadcast over rows)
    g = _gelu_tanh(h)                         # f32 elementwise (VPU/EUP)

    # (tm, ti) bf16 @ (ti, Dp) bf16 -> accumulate f32 over the inter-dim tiles
    acc_ref[...] += jnp.dot(g.astype(jnp.bfloat16), w2_ref[...],
                            preferred_element_type=jnp.float32)

    @pl.when(i == pl.num_programs(1) - 1)
    def _():
        out_ref[...] = (acc_ref[...] + b2_ref[...]).astype(out_ref.dtype)


def positionwise_ffn(x, w1, b1, w2, b2, *, tm_max=256, ti_max=512):
    """x: (B, L, D) f32.  w1: (D, I), b1: (I,), w2: (I, D), b2: (D,).  Returns (B, L, D) f32."""
    B, L, D = x.shape
    I = w1.shape[1]
    M = B * L

    # Lane-dense padding (last dims -> multiples of 128).
    Dp = _round_up(D, 128)
    Ip = _round_up(I, 128)

    # Row tile: sublane-aligned; split so the parallel axis exposes >= 2 programs
    # when there is enough work (v7x has 2 TensorCores, and >=2 programs gives the
    # pipeline something to overlap).
    tm = min(tm_max, max(8, _round_up(M, 8) // 2))
    tm = _round_up(tm, 8)
    Mp = _round_up(M, tm)

    # Intermediate-dim tile: largest multiple of 128 that (a) divides Ip exactly
    # (no extra reduction-axis padding) and (b) stays <= ti_max.
    n_lanes = Ip // 128
    best = 1
    for d in range(1, n_lanes + 1):
        if n_lanes % d == 0 and 128 * d <= ti_max:
            best = d
    ti = 128 * best

    # Zero-pad; padded rows/cols contribute exactly zero and are sliced off below.
    xp = jnp.zeros((Mp, Dp), jnp.bfloat16).at[:M, :D].set(
        x.reshape(M, D).astype(jnp.bfloat16))
    w1p = jnp.zeros((Dp, Ip), jnp.bfloat16).at[:D, :I].set(w1.astype(jnp.bfloat16))
    b1p = jnp.zeros((1, Ip), jnp.float32).at[:, :I].set(b1.reshape(1, I))
    w2p = jnp.zeros((Ip, Dp), jnp.bfloat16).at[:I, :D].set(w2.astype(jnp.bfloat16))
    b2p = jnp.zeros((1, Dp), jnp.float32).at[:, :D].set(b2.reshape(1, D))

    grid = (Mp // tm, Ip // ti)

    out = pl.pallas_call(
        ffn_kernel,
        out_shape=jax.ShapeDtypeStruct((Mp, Dp), jnp.float32),
        grid_spec=pltpu.PrefetchScalarGridSpec(
            num_scalar_prefetch=0,
            grid=grid,
            in_specs=[
                pl.BlockSpec((tm, Dp), lambda m, i: (m, 0)),   # x rows (resident across i)
                pl.BlockSpec((Dp, ti), lambda m, i: (0, i)),   # w1 tile (streamed over i)
                pl.BlockSpec((1, ti),  lambda m, i: (0, i)),   # b1 tile
                pl.BlockSpec((ti, Dp), lambda m, i: (i, 0)),   # w2 tile (streamed over i)
                pl.BlockSpec((1, Dp),  lambda m, i: (0, 0)),   # b2 (constant)
            ],
            out_specs=pl.BlockSpec((tm, Dp), lambda m, i: (m, 0)),
            scratch_shapes=[pltpu.VMEM((tm, Dp), jnp.float32)],  # f32 accumulator
        ),
        compiler_params=pltpu.CompilerParams(
            dimension_semantics=("parallel", "arbitrary")),
    )(xp, w1p, b1p, w2p, b2p)

    return out[:M, :D].reshape(B, L, D)


def reference_jax(x, w1, b1, w2, b2):
    """Pure-JAX f32 reference mirroring the PyTorch forward (dropout = identity)."""
    h = x @ w1 + b1
    return _gelu_tanh(h) @ w2 + b2


if __name__ == "__main__":
    # Small shapes implied by the module: batch=2, seq=8, h_dim=32, inter_dim=64
    B, L, D, I = 2, 8, 32, 64

    key = jax.random.PRNGKey(0)
    k1, k2, k3, k4, k5 = jax.random.split(key, 5)

    scale = 0.1
    w1 = scale * jax.random.normal(k1, (D, I), jnp.float32)   # stored (in, out)
    b1 = scale * jax.random.normal(k2, (I,), jnp.float32)
    w2 = scale * jax.random.normal(k3, (I, D), jnp.float32)
    b2 = scale * jax.random.normal(k4, (D,), jnp.float32)
    x = jax.random.normal(k5, (B, L, D), jnp.float32)

    ffn = jax.jit(positionwise_ffn)
    out = ffn(x, w1, b1, w2, b2)
    out = jax.block_until_ready(out)

    ref = reference_jax(x, w1, b1, w2, b2)
    assert out.shape == (B, L, D)
    max_diff = jnp.max(jnp.abs(out - ref))
    # bf16 MXU operands -> looser tolerance than a pure-f32 kernel
    assert jnp.allclose(out, ref, atol=2e-2, rtol=2e-2), f"max abs diff {max_diff}"

    print("KERNEL_OK")
</pallas_src>

<mosaic_0001>
module attributes {stable_mosaic.version = 11 : i64} {
  func.func @ffn_kernel(%arg0: i32, %arg1: i32, %arg2: memref<8x128xbf16, #tpu.memory_space<vmem>>, %arg3: memref<128x128xbf16, #tpu.memory_space<vmem>>, %arg4: memref<1x128xf32, #tpu.memory_space<vmem>>, %arg5: memref<128x128xbf16, #tpu.memory_space<vmem>>, %arg6: memref<1x128xf32, #tpu.memory_space<vmem>>, %arg7: memref<8x128xf32, #tpu.memory_space<vmem>>, %arg8: memref<8x128xf32, #tpu.memory_space<vmem>>) attributes {dimension_semantics = [#tpu.dimension_semantics<parallel>, #tpu.dimension_semantics<arbitrary>], iteration_bounds = array<i64: 2, 1>, scalar_prefetch = 0 : i64, scratch_operands = 1 : i64, tpu.core_type = #tpu.core_type<tc>, window_params = [{transform_indices = @transform_0, window_bounds = array<i64: 8, 128>}, {transform_indices = @transform_1, window_bounds = array<i64: 128, 128>}, {transform_indices = @transform_2, window_bounds = array<i64: 1, 128>}, {transform_indices = @transform_3, window_bounds = array<i64: 128, 128>}, {pipeline_mode = #tpu.pipeline_mode<synchronous>, transform_indices = @transform_4, window_bounds = array<i64: 1, 128>}, {transform_indices = @transform_5, window_bounds = array<i64: 8, 128>}]} {
    %c0_i32 = arith.constant 0 : i32
    %0 = arith.cmpi eq, %arg1, %c0_i32 : i32
    %1 = arith.extui %0 : i1 to i32
    %c0_i32_0 = arith.constant 0 : i32
    %2 = arith.cmpi ne, %1, %c0_i32_0 : i32
    scf.if %2 {
      %cst_19 = arith.constant 0.000000e+00 : f32
      %31 = vector.broadcast %cst_19 : f32 to vector<8x128xf32>
      %c0_20 = arith.constant 0 : index
      %c0_21 = arith.constant 0 : index
      %32 = vector.load %arg8[%c0_20, %c0_21] : memref<8x128xf32, #tpu.memory_space<vmem>>, vector<8x128xf32>
      tpu.vector_store %arg8[%c0_20, %c0_21], %31 {strides = array<i32>} : memref<8x128xf32, #tpu.memory_space<vmem>>, vector<8x128xf32>,
    } else {
    }
    %c0 = arith.constant 0 : index
    %c0_1 = arith.constant 0 : index
    %3 = vector.load %arg2[%c0, %c0_1] : memref<8x128xbf16, #tpu.memory_space<vmem>>, vector<8x128xbf16>
    %c0_2 = arith.constant 0 : index
    %c0_3 = arith.constant 0 : index
    %4 = vector.load %arg3[%c0_2, %c0_3] : memref<128x128xbf16, #tpu.memory_space<vmem>>, vector<128x128xbf16>
    %cst = arith.constant dense<0.000000e+00> : vector<8x128xf32>
    %5 = tpu.matmul %3, %4, %cst {dimension_numbers = #tpu.dot_dimension_numbers<[1], [0], [0], [1], [0, 0, 1, 1], [], []>} : vector<8x128xbf16>, vector<128x128xbf16>, vector<8x128xf32> -> vector<8x128xf32>
    %c0_4 = arith.constant 0 : index
    %c0_5 = arith.constant 0 : index
    %6 = vector.load %arg4[%c0_4, %c0_5] : memref<1x128xf32, #tpu.memory_space<vmem>>, vector<1x128xf32>
    %7 = vector.broadcast %6 : vector<1x128xf32> to vector<8x128xf32>
    %8 = arith.addf %5, %7 : vector<8x128xf32>
    %cst_6 = arith.constant 5.000000e-01 : f32
    %9 = vector.broadcast %cst_6 : f32 to vector<8x128xf32>
    %10 = arith.mulf %9, %8 : vector<8x128xf32>
    %cst_7 = arith.constant 4.471500e-02 : f32
    %11 = vector.broadcast %cst_7 : f32 to vector<8x128xf32>
    %12 = arith.mulf %11, %8 : vector<8x128xf32>
    %13 = arith.mulf %12, %8 : vector<8x128xf32>
    %14 = arith.mulf %13, %8 : vector<8x128xf32>
    %15 = arith.addf %8, %14 : vector<8x128xf32>
    %cst_8 = arith.constant 0.797884583 : f32
    %16 = vector.broadcast %cst_8 : f32 to vector<8x128xf32>
    %17 = arith.mulf %16, %15 : vector<8x128xf32>
    %18 = math.tanh %17 : vector<8x128xf32>
    %cst_9 = arith.constant 1.000000e+00 : f32
    %19 = vector.broadcast %cst_9 : f32 to vector<8x128xf32>
    %20 = arith.addf %19, %18 : vector<8x128xf32>
    %21 = arith.mulf %10, %20 : vector<8x128xf32>
    %c0_10 = arith.constant 0 : index
    %c0_11 = arith.constant 0 : index
    %22 = vector.load %arg8[%c0_10, %c0_11] : memref<8x128xf32, #tpu.memory_space<vmem>>, vector<8x128xf32>
    %23 = arith.truncf %21 : vector<8x128xf32> to vector<8x128xbf16>
    %c0_12 = arith.constant 0 : index
    %c0_13 = arith.constant 0 : index
    %24 = vector.load %arg5[%c0_12, %c0_13] : memref<128x128xbf16, #tpu.memory_space<vmem>>, vector<128x128xbf16>
    %cst_14 = arith.constant dense<0.000000e+00> : vector<8x128xf32>
    %25 = tpu.matmul %23, %24, %cst_14 {dimension_numbers = #tpu.dot_dimension_numbers<[1], [0], [0], [1], [0, 0, 1, 1], [], []>} : vector<8x128xbf16>, vector<128x128xbf16>, vector<8x128xf32> -> vector<8x128xf32>
    %26 = arith.addf %22, %25 : vector<8x128xf32>
    %c0_15 = arith.constant 0 : index
    %c0_16 = arith.constant 0 : index
    %27 = vector.load %arg8[%c0_15, %c0_16] : memref<8x128xf32, #tpu.memory_space<vmem>>, vector<8x128xf32>
    tpu.vector_store %arg8[%c0_15, %c0_16], %26 {strides = array<i32>} : memref<8x128xf32, #tpu.memory_space<vmem>>, vector<8x128xf32>,
    %c0_i32_17 = arith.constant 0 : i32
    %28 = arith.cmpi eq, %arg1, %c0_i32_17 : i32
    %29 = arith.extui %28 : i1 to i32
    %c0_i32_18 = arith.constant 0 : i32
    %30 = arith.cmpi ne, %29, %c0_i32_18 : i32
    scf.if %30 {
      %c0_19 = arith.constant 0 : index
      %c0_20 = arith.constant 0 : index
      %31 = vector.load %arg8[%c0_19, %c0_20] : memref<8x128xf32, #tpu.memory_space<vmem>>, vector<8x128xf32>
      %c0_21 = arith.constant 0 : index
      %c0_22 = arith.constant 0 : index
      %32 = vector.load %arg6[%c0_21, %c0_22] : memref<1x128xf32, #tpu.memory_space<vmem>>, vector<1x128xf32>
      %33 = vector.broadcast %32 : vector<1x128xf32> to vector<8x128xf32>
      %34 = arith.addf %31, %33 : vector<8x128xf32>
      %c0_23 = arith.constant 0 : index
      %c0_24 = arith.constant 0 : index
      %35 = vector.load %arg7[%c0_23, %c0_24] : memref<8x128xf32, #tpu.memory_space<vmem>>, vector<8x128xf32>
      tpu.vector_store %arg7[%c0_23, %c0_24], %34 {strides = array<i32>} : memref<8x128xf32, #tpu.memory_space<vmem>>, vector<8x128xf32>,
    } else {
    }
    return
  }
  func.func @transform_0(%arg0: i32, %arg1: i32) -> (i32, i32) {
    %c0_i32 = arith.constant 0 : i32
    %c0_i32_0 = arith.constant 0 : i32
    return %arg0, %c0_i32 : i32, i32
  }
  func.func @transform_1(%arg0: i32, %arg1: i32) -> (i32, i32) {
    %c0_i32 = arith.constant 0 : i32
    %c0_i32_0 = arith.constant 0 : i32
    return %c0_i32, %arg1 : i32, i32
  }
  func.func @transform_2(%arg0: i32, %arg1: i32) -> (i32, i32) {
    %c0_i32 = arith.constant 0 : i32
    %c0_i32_0 = arith.constant 0 : i32
    return %c0_i32, %arg1 : i32, i32
  }
  func.func @transform_3(%arg0: i32, %arg1: i32) -> (i32, i32) {
    %c0_i32 = arith.constant 0 : i32
    %c0_i32_0 = arith.constant 0 : i32
    return %arg1, %c0_i32 : i32, i32
  }
  func.func @transform_4(%arg0: i32, %arg1: i32) -> (i32, i32) {
    %c0_i32 = arith.constant 0 : i32
    %c0_i32_0 = arith.constant 0 : i32
    %c0_i32_1 = arith.constant 0 : i32
    return %c0_i32, %c0_i32_0 : i32, i32
  }
  func.func @transform_5(%arg0: i32, %arg1: i32) -> (i32, i32) {
    %c0_i32 = arith.constant 0 : i32
    %c0_i32_0 = arith.constant 0 : i32
    return %arg0, %c0_i32 : i32, i32
  }
}

</mosaic_0001>

<llo_original>
// kernel: positionwise_ffn.1
$region0: #{positionwise_ffn.1}
  #allocation0 [shape = 'u32[]', space=smem, size = 0x4, offset = 0x4, fixed_abs, tag = 'smem constant byte address 0x4 - core index']
  #allocation1 [shape = 'u32[144,128]{1,0:T(1,128)}', space=vmem, size = 0x12000, scoped, tag = 'internal scratch']
  #allocation2 [shape = 'f32[8,128]{1,0:T(8,128)}', space=vmem, size = 0x1000, scoped, tag = 'scratch operand']
  %s0 = inlined_call_operand.vmem [shape: bf16[16,128], index: 0, kind: input, shape index: {}]
  %s1 = inlined_call_operand.vmem [shape: bf16[128,128], index: 1, kind: input, shape index: {}]
  %s2 = inlined_call_operand.vmem [shape: f32[1,128], index: 2, kind: input, shape index: {}]
  %s3 = inlined_call_operand.vmem [shape: bf16[128,128], index: 3, kind: input, shape index: {}]
  %s4 = inlined_call_operand.vmem [shape: f32[1,128], index: 4, kind: input, shape index: {}]
  %s5 = inlined_call_operand.vmem [shape: f32[16,128], index: 5, kind: output, shape index: {}]
  %s6 = sld [smem:[#allocation0]]
  $region61: #{positionwise_ffn.1} parent=0
    _
  %s8 = ssub.s32 1, %s6
  %s9 = scalar_select 0, %s8, %s6
  loop: start=0, step=1, limit=4
  $region2: #{positionwise_ffn.1} parent=0 // loop_pre_header
    _
  $region3: #{positionwise_ffn.1} parent=0 // loop_header
    %s11 = sphi 0, %s15
    %p12 = scmp.ge.s32.totalorder %s11, 4
    %s18 = sphi 0, %s30
    %s19 = sphi 0, %s26
    %s20 = sphi 0, %s18
    %s21 = sphi 0, %s19
    %s22 = sphi 0, %s20
    %s23 = sphi 0, %s21
    %s33 = sphi 0, %s35
    %s36 = sphi 0, %s33
    %s37 = sphi 0, %s36
    %s53 = sphi 0, %s37
    %s59 = sphi 0, %s61
    %s62 = sphi 0, %s59
    %s63 = sphi 0, %s62
    %s79 = sphi 0, %s63
    %s85 = sphi 0, %s87
    %s88 = sphi 0, %s85
    %s89 = sphi 0, %s88
    %s105 = sphi 0, %s89
    %s111 = sphi 0, %s113
    %s114 = sphi 0, %s111
    %s115 = sphi 0, %s114
    %s131 = sphi 0, %s115
    %s135 = sphi 0, %s135
    %s137 = sphi 0, %s135
    %s138 = sphi 0, %s137
    %s152 = sphi 0, %s138
    %s158 = sphi 0, %s160
    %s161 = sphi 0, %s158
    %s162 = sphi 0, %s161
    %s178 = sphi 0, %s162
  $region4: #{positionwise_ffn.1} parent=0 // loop_header_branch
    %14 = sbr.rel (%p12) target = $region8
  $region5: #{positionwise_ffn.1} parent=0 // loop_body
    %s16 = ssub.s32 %s11, 1
    %s17 = ssub.s32 %s11, 2
    %s24 = sadd.s32 1, %s19
    %p25 = scmp.ge.s32.totalorder %s24, 1
    %s26 = scalar_select %p25, 0, %s24
    %s27 = sadd.s32 1, %s18
    %s28 = scalar_select %p25, %s27, %s18
    %p29 = scmp.ge.s32.totalorder %s28, 2
    %s30 = scalar_select %p29, 0, %s28
    %s31 = ssub.s32 %s18, %s30
    %p32 = scmp.eq.s32.totalorder %s31, 0
    %s34 = sadd.s32 %s33, 1
    %s35 = scalar_select %p32, %s33, %s34
    %p38 = pneg %p32
    %p39 = scmp.eq.s32.totalorder %s11, 1
    %p40 = por %p38, %p39
    %p41 = scmp.ne.s32.totalorder %s33, %s36
    %p42 = scmp.eq.s32.totalorder %s11, 0
    %p43 = por %p41, %p42
    %p44 = scmp.ne.s32.totalorder %s33, %s36
    %p45 = scmp.eq.s32.totalorder %s16, 1
    %p46 = por %p44, %p45
    %p47 = scmp.ne.s32.totalorder %s36, %s37
    %p48 = scmp.eq.s32.totalorder %s16, 0
    %p49 = por %p47, %p48
    %p50 = scmp.ne.s32.totalorder %s36, %s37
    %p51 = scmp.eq.s32.totalorder %s17, 1
    %p52 = por %p50, %p51
    %p54 = scmp.ne.s32.totalorder %s37, %s53
    %p55 = scmp.eq.s32.totalorder %s17, 0
    %p56 = por %p54, %p55
    %s57 = ssub.s32 %s19, %s26
    %p58 = scmp.eq.s32.totalorder %s57, 0
    %s60 = sadd.s32 %s59, 1
    %s61 = scalar_select %p58, %s59, %s60
    %p64 = pneg %p58
    %p65 = scmp.eq.s32.totalorder %s11, 1
    %p66 = por %p64, %p65
    %p67 = scmp.ne.s32.totalorder %s59, %s62
    %p68 = scmp.eq.s32.totalorder %s11, 0
    %p69 = por %p67, %p68
    %p70 = scmp.ne.s32.totalorder %s59, %s62
    %p71 = scmp.eq.s32.totalorder %s16, 1
    %p72 = por %p70, %p71
    %p73 = scmp.ne.s32.totalorder %s62, %s63
    %p74 = scmp.eq.s32.totalorder %s16, 0
    %p75 = por %p73, %p74
    %p76 = scmp.ne.s32.totalorder %s62, %s63
    %p77 = scmp.eq.s32.totalorder %s17, 1
    %p78 = por %p76, %p77
    %p80 = scmp.ne.s32.totalorder %s63, %s79
    %p81 = scmp.eq.s32.totalorder %s17, 0
    %p82 = por %p80, %p81
    %s83 = ssub.s32 %s19, %s26
    %p84 = scmp.eq.s32.totalorder %s83, 0
    %s86 = sadd.s32 %s85, 1
    %s87 = scalar_select %p84, %s85, %s86
    %p90 = pneg %p84
    %p91 = scmp.eq.s32.totalorder %s11, 1
    %p92 = por %p90, %p91
    %p93 = scmp.ne.s32.totalorder %s85, %s88
    %p94 = scmp.eq.s32.totalorder %s11, 0
    %p95 = por %p93, %p94
    %p96 = scmp.ne.s32.totalorder %s85, %s88
    %p97 = scmp.eq.s32.totalorder %s16, 1
    %p98 = por %p96, %p97
    %p99 = scmp.ne.s32.totalorder %s88, %s89
    %p100 = scmp.eq.s32.totalorder %s16, 0
    %p101 = por %p99, %p100
    %p102 = scmp.ne.s32.totalorder %s88, %s89
    %p103 = scmp.eq.s32.totalorder %s17, 1
    %p104 = por %p102, %p103
    %p106 = scmp.ne.s32.totalorder %s89, %s105
    %p107 = scmp.eq.s32.totalorder %s17, 0
    %p108 = por %p106, %p107
    %s109 = ssub.s32 %s19, %s26
    %p110 = scmp.eq.s32.totalorder %s109, 0
    %s112 = sadd.s32 %s111, 1
    %s113 = scalar_select %p110, %s111, %s112
    %p116 = pneg %p110
    %p117 = scmp.eq.s32.totalorder %s11, 1
    %p118 = por %p116, %p117
    %p119 = scmp.ne.s32.totalorder %s111, %s114
    %p120 = scmp.eq.s32.totalorder %s11, 0
    %p121 = por %p119, %p120
    %p122 = scmp.ne.s32.totalorder %s111, %s114
    %p123 = scmp.eq.s32.totalorder %s16, 1
    %p124 = por %p122, %p123
    %p125 = scmp.ne.s32.totalorder %s114, %s115
    %p126 = scmp.eq.s32.totalorder %s16, 0
    %p127 = por %p125, %p126
    %p128 = scmp.ne.s32.totalorder %s114, %s115
    %p129 = scmp.eq.s32.totalorder %s17, 1
    %p130 = por %p128, %p129
    %p132 = scmp.ne.s32.totalorder %s115, %s131
    %p133 = scmp.eq.s32.totalorder %s17, 0
    %p134 = por %p132, %p133
    %s136 = sadd.s32 %s135, 1
    %p139 = scmp.eq.s32.totalorder %s11, 1
    %p140 = scmp.ne.s32.totalorder %s135, %s137
    %p141 = scmp.eq.s32.totalorder %s11, 0
    %p142 = por %p140, %p141
    %p143 = scmp.ne.s32.totalorder %s135, %s137
    %p144 = scmp.eq.s32.totalorder %s16, 1
    %p145 = por %p143, %p144
    %p146 = scmp.ne.s32.totalorder %s137, %s138
    %p147 = scmp.eq.s32.totalorder %s16, 0
    %p148 = por %p146, %p147
    %p149 = scmp.ne.s32.totalorder %s137, %s138
    %p150 = scmp.eq.s32.totalorder %s17, 1
    %p151 = por %p149, %p150
    %p153 = scmp.ne.s32.totalorder %s138, %s152
    %p154 = scmp.eq.s32.totalorder %s17, 0
    %p155 = por %p153, %p154
    %s156 = ssub.s32 %s18, %s30
    %p157 = scmp.eq.s32.totalorder %s156, 0
    %s159 = sadd.s32 %s158, 1
    %s160 = scalar_select %p157, %s158, %s159
    %p163 = pneg %p157
    %p164 = scmp.eq.s32.totalorder %s11, 1
    %p165 = por %p163, %p164
    %p166 = scmp.ne.s32.totalorder %s158, %s161
    %p167 = scmp.eq.s32.totalorder %s11, 0
    %p168 = por %p166, %p167
    %p169 = scmp.ne.s32.totalorder %s158, %s161
    %p170 = scmp.eq.s32.totalorder %s16, 1
    %p171 = por %p169, %p170
    %p172 = scmp.ne.s32.totalorder %s161, %s162
    %p173 = scmp.eq.s32.totalorder %s16, 0
    %p174 = por %p172, %p173
    %p175 = scmp.ne.s32.totalorder %s161, %s162
    %p176 = scmp.eq.s32.totalorder %s17, 1
    %p177 = por %p175, %p176
    %p179 = scmp.ne.s32.totalorder %s162, %s178
    %p180 = scmp.eq.s32.totalorder %s17, 0
    %p181 = por %p179, %p180
    %p182 = scmp.le.s32.totalorder 1, %s11
    %p183 = scmp.lt.s32.totalorder %s11, 3
    %p184 = pnand %p182, %p183
    %p185 = pneg %p184
    // Predicated region
    $region9: #{positionwise_ffn.1} parent=5 // pred_check
      _
    $region10: #{positionwise_ffn.1} parent=5 // pred_check_branch
      %187 = sbr.rel (%p184) target = $region12
    $region11: #{positionwise_ffn.1} parent=5 // pred_region
      %s188 = ssub.s32 %s11, 1
      // Predicated region
      $region13: #{positionwise_ffn.1} parent=11 // pred_check
        %p189 = pneg %p75
      $region14: #{positionwise_ffn.1} parent=11 // pred_check_branch
        %191 = sbr.rel (%p189) target = $region16
      $region15: #{positionwise_ffn.1} parent=11 // pred_region
        %p192 = scmp.lt.s32.totalorder %s21, 0
        %s193 = scalar_select %p192, %s21, 0
        %s194 = smul.addr %s193, 4
        %s195 = scalar_lea.vmem %s1, %s194
      $region16: #{positionwise_ffn.1} parent=11 // pred_fallthru
        _
      // Predicated region
      $region17: #{positionwise_ffn.1} parent=11 // pred_check
        %p196 = pneg %p101
      $region18: #{positionwise_ffn.1} parent=11 // pred_check_branch
        %198 = sbr.rel (%p196) target = $region20
      $region19: #{positionwise_ffn.1} parent=11 // pred_region
        %p199 = scmp.lt.s32.totalorder %s21, 0
        %s200 = scalar_select %p199, %s21, 0
        %s201 = scalar_lea.vmem %s2, %s200
      $region20: #{positionwise_ffn.1} parent=11 // pred_fallthru
        _
      // Predicated region
      $region21: #{positionwise_ffn.1} parent=11 // pred_check
        %p202 = pneg %p127
      $region22: #{positionwise_ffn.1} parent=11 // pred_check_branch
        %204 = sbr.rel (%p202) target = $region24
      $region23: #{positionwise_ffn.1} parent=11 // pred_region
        %s205 = smul.u32 16, %s21
        %p206 = scmp.lt.s32.totalorder %s205, 15
        %s207 = scalar_select %p206, %s205, 15
        %s208 = smul.addr %s207, 4
        %s209 = scalar_lea.vmem %s3, %s208
        %s210 = smul.u32 16, %s21
      $region24: #{positionwise_ffn.1} parent=11 // pred_fallthru
        _
      // Predicated region
      $region25: #{positionwise_ffn.1} parent=11 // pred_check
        %p211 = pneg %p148
      $region26: #{positionwise_ffn.1} parent=11 // pred_check_branch
        %213 = sbr.rel (%p211) target = $region28
      $region27: #{positionwise_ffn.1} parent=11 // pred_region
        _
      $region28: #{positionwise_ffn.1} parent=11 // pred_fallthru
        _
    $region12: #{positionwise_ffn.1} parent=5 // pred_fallthru
      _
    %p214 = scmp.lt.s32.totalorder %s11, 2
    // Predicated region
    $region29: #{positionwise_ffn.1} parent=5 // pred_check
      %p215 = pneg %p214
    $region30: #{positionwise_ffn.1} parent=5 // pred_check_branch
      %217 = sbr.rel (%p215) target = $region32
    $region31: #{positionwise_ffn.1} parent=5 // pred_region
      // Predicated region
      $region33: #{positionwise_ffn.1} parent=31 // pred_check
        %p218 = pneg %p43
      $region34: #{positionwise_ffn.1} parent=31 // pred_check_branch
        %220 = sbr.rel (%p218) target = $region36
      $region35: #{positionwise_ffn.1} parent=31 // pred_region
        %p221 = scmp.lt.s32.totalorder %s18, 1
        %s222 = scalar_select %p221, %s18, 1
        %s223 = smul.addr %s222, 4
        %s224 = scalar_lea.vmem %s0, %s223
      $region36: #{positionwise_ffn.1} parent=31 // pred_fallthru
        _
    $region32: #{positionwise_ffn.1} parent=5 // pred_fallthru
      _
    %p225 = scmp.le.s32.totalorder 1, %s11
    %p226 = scmp.lt.s32.totalorder %s11, 3
    %p227 = pnand %p225, %p226
    %p228 = pneg %p227
    // Predicated region
    $region37: #{positionwise_ffn.1} parent=5 // pred_check
      _
    $region38: #{positionwise_ffn.1} parent=5 // pred_check_branch
      %230 = sbr.rel (%p227) target = $region40
    $region39: #{positionwise_ffn.1} parent=5 // pred_region
      %s231 = ssub.s32 %s11, 1
      %p232 = scmp.lt.s32.totalorder %s20, 1
      %s233 = scalar_select %p232, %s20, 1
      %s234 = smul.addr %s233, 4
      %s235 = scalar_lea.vmem %s0, %s234
      %p236 = pneg %p49
      %p237 = pneg %p46
      %p238 = scmp.lt.s32.totalorder %s21, 0
      %s239 = scalar_select %p238, %s21, 0
      %s240 = smul.addr %s239, 4
      %s241 = scalar_lea.vmem %s1, %s240
      %p242 = pneg %p75
      %p243 = pneg %p72
      %p244 = scmp.lt.s32.totalorder %s21, 0
      %s245 = scalar_select %p244, %s21, 0
      %s246 = scalar_lea.vmem %s2, %s245
      %p247 = pneg %p101
      %p248 = pneg %p98
      %s249 = smul.u32 16, %s21
      %p250 = scmp.lt.s32.totalorder %s249, 15
      %s251 = scalar_select %p250, %s249, 15
      %s252 = smul.addr %s251, 4
      %s253 = scalar_lea.vmem %s3, %s252
      %p254 = pneg %p127
      %p255 = pneg %p124
      %p256 = pneg %p148
      %p257 = pneg %p145
      %p258 = pneg %p174
      %p259 = pneg %p171
      %p260 = scmp.lt.s32.totalorder %s20, 1
      %s261 = scalar_select %p260, %s20, 1
      %s262 = smul.addr %s261, 8
      %s263 = scalar_lea.vmem %s5, %s262
      %p264 = scmp.lt.s32.totalorder %s20, 1
      %s265 = scalar_select %p264, %s20, 1
      %s266 = smul.addr %s265, 4
      %s267 = scalar_lea.vmem %s0, %s266
      %p268 = scmp.lt.s32.totalorder %s21, 0
      %s269 = scalar_select %p268, %s21, 0
      %s270 = smul.addr %s269, 4
      %s271 = scalar_lea.vmem %s1, %s270
      %p272 = scmp.lt.s32.totalorder %s21, 0
      %s273 = scalar_select %p272, %s21, 0
      %s274 = scalar_lea.vmem %s2, %s273
      %s275 = smul.u32 16, %s21
      %p276 = scmp.lt.s32.totalorder %s275, 15
      %s277 = scalar_select %p276, %s275, 15
      %s278 = smul.addr %s277, 4
      %s279 = scalar_lea.vmem %s3, %s278
      %s280 = smul.u32 16, %s21
      %p281 = scmp.lt.s32.totalorder %s20, 1
      %s282 = scalar_select %p281, %s20, 1
      %s283 = smul.addr %s282, 8
      %s284 = scalar_lea.vmem %s5, %s283
      %p286 = scmp.eq.s32.totalorder %s21, 0
      // Predicated region
      $region41: #{positionwise_ffn.1} parent=39 // pred_check
        %p287 = pneg %p286
      $region42: #{positionwise_ffn.1} parent=39 // pred_check_branch
        %289 = sbr.rel (%p287) target = $region44
      $region43: #{positionwise_ffn.1} parent=39 // pred_region
        %290 = vst [vmem:[#allocation2] sm:$0xff] 0.0
      $region44: #{positionwise_ffn.1} parent=39 // pred_fallthru
        _
      %v291 = vld [vmem:[%s267] sm:$0xf]
      %v292 = vld [vmem:[%s271] sm:$0xf]
      %v293 = vld [vmem:[%s271 + $0x4] sm:$0xf]
      %v294 = vld [vmem:[%s271 + $0x8] sm:$0xf]
      %v295 = vld [vmem:[%s271 + $0xc] sm:$0xf]
      %v296 = vld [vmem:[%s271 + $0x10] sm:$0xf]
      %v297 = vld [vmem:[%s271 + $0x14] sm:$0xf]
      %v298 = vld [vmem:[%s271 + $0x18] sm:$0xf]
      %v299 = vld [vmem:[%s271 + $0x1c] sm:$0xf]
      %v300 = vld [vmem:[%s271 + $0x20] sm:$0xf]
      %v301 = vld [vmem:[%s271 + $0x24] sm:$0xf]
      %v302 = vld [vmem:[%s271 + $0x28] sm:$0xf]
      %v303 = vld [vmem:[%s271 + $0x2c] sm:$0xf]
      %v304 = vld [vmem:[%s271 + $0x30] sm:$0xf]
      %v305 = vld [vmem:[%s271 + $0x34] sm:$0xf]
      %v306 = vld [vmem:[%s271 + $0x38] sm:$0xf]
      %v307 = vld [vmem:[%s271 + $0x3c] sm:$0xf]
      %v308 = vld [vmem:[%s274] sm:$0x1]
      %v310 = vlaneseq
      %v311 = vshrl.u32 %v310, 7
      %v312 = vsub.s32 0, %v311
      %v313 = vrot.slane %v308, %v312
      %v331 = vunpack.c.l.b16 %v292
      %v332 = vunpack.c.l.b16 %v293
      %v333 = vunpack.c.l.b16 %v294
      %v334 = vunpack.c.l.b16 %v295
      %v335 = vunpack.c.l.b16 %v296
      %v336 = vunpack.c.l.b16 %v297
      %v337 = vunpack.c.l.b16 %v298
      %v338 = vunpack.c.l.b16 %v299
      %v339 = vunpack.c.l.b16 %v300
      %v340 = vunpack.c.l.b16 %v301
      %v341 = vunpack.c.l.b16 %v302
      %v342 = vunpack.c.l.b16 %v303
      %v343 = vunpack.c.l.b16 %v304
      %v344 = vunpack.c.l.b16 %v305
      %v345 = vunpack.c.l.b16 %v306
      %v346 = vunpack.c.l.b16 %v307
      %v347 = vpack.c.b16 %v332, %v331
      %v348 = vpack.c.b16 %v334, %v333
      %v349 = vpack.c.b16 %v336, %v335
      %v350 = vpack.c.b16 %v338, %v337
      %v351 = vpack.c.b16 %v340, %v339
      %v352 = vpack.c.b16 %v342, %v341
      %v353 = vpack.c.b16 %v344, %v343
      %v354 = vpack.c.b16 %v346, %v345
      %363 = vmatprep.subr.bf16.mxu0 0
      %364 = vmatpush1.bf16.msra.mxu0 %v347
      %365 = vmatprep.subr.bf16.mxu0 0
      %366 = vmatpush1.bf16.msra.mxu0 %v348
      %367 = vmatprep.subr.bf16.mxu0 0
      %368 = vmatpush1.bf16.msra.mxu0 %v349
      %369 = vmatprep.subr.bf16.mxu0 0
      %370 = vmatpush1.bf16.msra.mxu0 %v350
      %371 = vmatprep.subr.bf16.mxu0 0
      %372 = vmatpush1.bf16.msra.mxu0 %v351
      %373 = vmatprep.subr.bf16.mxu0 0
      %374 = vmatpush1.bf16.msra.mxu0 %v352
      %375 = vmatprep.subr.bf16.mxu0 0
      %376 = vmatpush1.bf16.msra.mxu0 %v353
      %377 = vmatprep.subr.bf16.mxu0 0
      %378 = vmatpush1.bf16.msra.mxu0 %v354
      %379 = vmatprep.subr.bf16.mxu0 0
      %380 = vmatpush1.bf16.msra.mxu0 0
      %381 = vmatprep.subr.bf16.mxu0 0
      %382 = vmatpush1.bf16.msra.mxu0 0
      %383 = vmatprep.subr.bf16.mxu0 0
      %384 = vmatpush1.bf16.msra.mxu0 0
      %385 = vmatprep.subr.bf16.mxu0 0
      %386 = vmatpush1.bf16.msra.mxu0 0
      %387 = vmatprep.subr.bf16.mxu0 0
      %388 = vmatpush1.bf16.msra.mxu0 0
      %389 = vmatprep.subr.bf16.mxu0 0
      %390 = vmatpush1.bf16.msra.mxu0 0
      %391 = vmatprep.subr.bf16.mxu0 0
      %392 = vmatpush1.bf16.msra.mxu0 0
      %393 = vmatprep.subr.bf16.mxu0 0
      %394 = vmatpush1.bf16.msra.mxu0 0
      %395 = vmatprep.mubr.bf16.mxu0 0
      %396 = vmatmul.mubr.bf16.gmra.mrb[0].mxu0 %v291
      %v397 = vpop.f32.mrb[0].mxu0
      %v398 = vadd.f32 %v313, %v397
      %v399 = vpop.f32.mrb[0].mxu0
      %v400 = vpop.f32.mrb[0].mxu0
      %v401 = vpop.f32.mrb[0].mxu0
      %402 = vdwg.mxu0
      %v403 = vmul.f32 %v398, 0.5
      %v404 = vmul.f32 %v398, 0.044715
      %v405 = vmul.f32 %v404, %v398
      %v406 = vmul.f32 %v405, %v398
      %v407 = vadd.f32 %v398, %v406
      %v408 = vmul.f32 %v407, 0.7978846
      %v409 = vtanh.pop %v408
      %v410 = vadd.f32 %v409, 1.0
      %v411 = vmul.f32 %v403, %v410
      %v412 = vld [vmem:[#allocation2] sm:$0xff]
      %v413 = vpack.c.bf16 %v411, %v411
      %v414 = vld [vmem:[%s279] sm:$0xf]
      %v415 = vld [vmem:[%s279 + $0x4] sm:$0xf]
      %v416 = vld [vmem:[%s279 + $0x8] sm:$0xf]
      %v417 = vld [vmem:[%s279 + $0xc] sm:$0xf]
      %v418 = vld [vmem:[%s279 + $0x10] sm:$0xf]
      %v419 = vld [vmem:[%s279 + $0x14] sm:$0xf]
      %v420 = vld [vmem:[%s279 + $0x18] sm:$0xf]
      %v421 = vld [vmem:[%s279 + $0x1c] sm:$0xf]
      %v422 = vld [vmem:[%s279 + $0x20] sm:$0xf]
      %v423 = vld [vmem:[%s279 + $0x24] sm:$0xf]
      %v424 = vld [vmem:[%s279 + $0x28] sm:$0xf]
      %v425 = vld [vmem:[%s279 + $0x2c] sm:$0xf]
      %v426 = vld [vmem:[%s279 + $0x30] sm:$0xf]
      %v427 = vld [vmem:[%s279 + $0x34] sm:$0xf]
      %v428 = vld [vmem:[%s279 + $0x38] sm:$0xf]
      %v429 = vld [vmem:[%s279 + $0x3c] sm:$0xf]
      %v446 = vunpack.c.l.b16 %v414
      %v447 = vunpack.c.l.b16 %v415
      %v448 = vunpack.c.l.b16 %v416
      %v449 = vunpack.c.l.b16 %v417
      %v450 = vunpack.c.l.b16 %v418
      %v451 = vunpack.c.l.b16 %v419
      %v452 = vunpack.c.l.b16 %v420
      %v453 = vunpack.c.l.b16 %v421
      %v454 = vunpack.c.l.b16 %v422
      %v455 = vunpack.c.l.b16 %v423
      %v456 = vunpack.c.l.b16 %v424
      %v457 = vunpack.c.l.b16 %v425
      %v458 = vunpack.c.l.b16 %v426
      %v459 = vunpack.c.l.b16 %v427
      %v460 = vunpack.c.l.b16 %v428
      %v461 = vunpack.c.l.b16 %v429
      %v462 = vpack.c.b16 %v447, %v446
      %v463 = vpack.c.b16 %v449, %v448
      %v464 = vpack.c.b16 %v451, %v450
      %v465 = vpack.c.b16 %v453, %v452
      %v466 = vpack.c.b16 %v455, %v454
      %v467 = vpack.c.b16 %v457, %v456
      %v468 = vpack.c.b16 %v459, %v458
      %v469 = vpack.c.b16 %v461, %v460
      %478 = vmatprep.subr.bf16.mxu0 0
      %479 = vmatpush1.bf16.msra.mxu0 %v462
      %480 = vmatprep.subr.bf16.mxu0 0
      %481 = vmatpush1.bf16.msra.mxu0 %v463
      %482 = vmatprep.subr.bf16.mxu0 0
      %483 = vmatpush1.bf16.msra.mxu0 %v464
      %484 = vmatprep.subr.bf16.mxu0 0
      %485 = vmatpush1.bf16.msra.mxu0 %v465
      %486 = vmatprep.subr.bf16.mxu0 0
      %487 = vmatpush1.bf16.msra.mxu0 %v466
      %488 = vmatprep.subr.bf16.mxu0 0
      %489 = vmatpush1.bf16.msra.mxu0 %v467
      %490 = vmatprep.subr.bf16.mxu0 0
      %491 = vmatpush1.bf16.msra.mxu0 %v468
      %492 = vmatprep.subr.bf16.mxu0 0
      %493 = vmatpush1.bf16.msra.mxu0 %v469
      %494 = vmatprep.subr.bf16.mxu0 0
      %495 = vmatpush1.bf16.msra.mxu0 0
      %496 = vmatprep.subr.bf16.mxu0 0
      %497 = vmatpush1.bf16.msra.mxu0 0
      %498 = vmatprep.subr.bf16.mxu0 0
      %499 = vmatpush1.bf16.msra.mxu0 0
      %500 = vmatprep.subr.bf16.mxu0 0
      %501 = vmatpush1.bf16.msra.mxu0 0
      %502 = vmatprep.subr.bf16.mxu0 0
      %503 = vmatpush1.bf16.msra.mxu0 0
      %504 = vmatprep.subr.bf16.mxu0 0
      %505 = vmatpush1.bf16.msra.mxu0 0
      %506 = vmatprep.subr.bf16.mxu0 0
      %507 = vmatpush1.bf16.msra.mxu0 0
      %508 = vmatprep.subr.bf16.mxu0 0
      %509 = vmatpush1.bf16.msra.mxu0 0
      %510 = vmatprep.mubr.bf16.mxu0 0
      %511 = vmatmul.mubr.bf16.gmra.mrb[0].mxu0 %v413
      %v512 = vpop.f32.mrb[0].mxu0
      %v513 = vadd.f32 0.0, %v512
      %v514 = vpop.f32.mrb[0].mxu0
      %v515 = vpop.f32.mrb[0].mxu0
      %v516 = vpop.f32.mrb[0].mxu0
      %517 = vdwg.mxu0
      %v518 = vadd.f32 %v412, %v513
      %519 = vst [vmem:[#allocation2] sm:$0xff] %v518
      // Predicated region
      $region45: #{positionwise_ffn.1} parent=39 // pred_check
        %p520 = pneg %p286
      $region46: #{positionwise_ffn.1} parent=39 // pred_check_branch
        %522 = sbr.rel (%p520) target = $region48
      $region47: #{positionwise_ffn.1} parent=39 // pred_region
        %v523 = vld [vmem:[#allocation2] sm:$0xff]
        %v524 = vld [vmem:[%s4] sm:$0x1]
        %v526 = vlaneseq
        %v527 = vshrl.u32 %v526, 7
        %v528 = vsub.s32 0, %v527
        %v529 = vrot.slane %v524, %v528
        %v531 = vadd.f32 %v523, %v529
        %532 = vst [vmem:[%s284] sm:$0xff] %v531
      $region48: #{positionwise_ffn.1} parent=39 // pred_fallthru
        _
      %p533 = scmp.lt.s32.totalorder %s20, 1
      %s534 = scalar_select %p533, %s20, 1
      %s535 = smul.addr %s534, 8
      %s536 = scalar_lea.vmem %s5, %s535
      // Predicated region
      $region49: #{positionwise_ffn.1} parent=39 // pred_check
        %p537 = pneg %p171
      $region50: #{positionwise_ffn.1} parent=39 // pred_check_branch
        %539 = sbr.rel (%p537) target = $region52
      $region51: #{positionwise_ffn.1} parent=39 // pred_region
        _
      $region52: #{positionwise_ffn.1} parent=39 // pred_fallthru
        _
    $region40: #{positionwise_ffn.1} parent=5 // pred_fallthru
      _
    %p540 = scmp.le.s32.totalorder 2, %s11
    // Predicated region
    $region53: #{positionwise_ffn.1} parent=5 // pred_check
      %p541 = pneg %p540
    $region54: #{positionwise_ffn.1} parent=5 // pred_check_branch
      %543 = sbr.rel (%p541) target = $region56
    $region55: #{positionwise_ffn.1} parent=5 // pred_region
      %s544 = ssub.s32 %s11, 2
      // Predicated region
      $region57: #{positionwise_ffn.1} parent=55 // pred_check
        %p545 = pneg %p177
      $region58: #{positionwise_ffn.1} parent=55 // pred_check_branch
        %547 = sbr.rel (%p545) target = $region60
      $region59: #{positionwise_ffn.1} parent=55 // pred_region
        %p548 = scmp.lt.s32.totalorder %s22, 1
        %s549 = scalar_select %p548, %s22, 1
        %s550 = smul.addr %s549, 8
        %s551 = scalar_lea.vmem %s5, %s550
      $region60: #{positionwise_ffn.1} parent=55 // pred_fallthru
        _
    $region56: #{positionwise_ffn.1} parent=5 // pred_fallthru
      _
  $region6: #{positionwise_ffn.1} parent=0 // loop_footer
    %s15 = sadd.s32 1, %s11
  $region7: #{positionwise_ffn.1} parent=0 // loop_footer_branch
    %10 = sbr.rel target = $region3
  $region8: #{positionwise_ffn.1} parent=0 // loop_exit
    _

</llo_original>
